<compile_context>
chip_gen: v6e
topology: v6e:2x2x1
jax: 0.10.0
libtpu: 0.0.40
codegen_flags: <defaults>
</compile_context>

<pallas_src>
import functools

import jax
import jax.numpy as jnp
from jax.experimental import pallas as pl
from jax.experimental.pallas import tpu as pltpu


def _dqr_nc_kernel(x_ref, w1_ref, b1_ref, w2_ref, b2_ref, mask_ref, m_ref,
                   o_ref, *, activation):
    # ---- fused first layer (value || delta), f32 accumulation, ReLU ----
    h = jnp.dot(x_ref[...], w1_ref[...],
                preferred_element_type=jnp.float32) + b1_ref[...]
    h = jnp.maximum(h, 0.0)

    # ---- fused second layer (block-diagonal): y = [v_raw | d_raw] ----
    y = jnp.dot(h.astype(w2_ref.dtype), w2_ref[...],
                preferred_element_type=jnp.float32) + b2_ref[...]

    # ---- delta nonlinearity (applied to all lanes, selected by mask) ----
    if activation == 'ELU':
        # ELU(d) + 1 == d + 1 (d > 0) else exp(d); clamp arg to avoid inf.
        delta = jnp.where(y > 0.0, y + 1.0, jnp.exp(jnp.minimum(y, 0.0)))
    elif activation == 'ReLU':
        delta = jnp.maximum(y, 0.0)
    elif activation == 'log':
        # softplus(d) = max(d,0) + log(1 + exp(-|d|))  (overflow-safe)
        delta = jnp.maximum(y, 0.0) + jnp.log(1.0 + jnp.exp(-jnp.abs(y)))
    else:
        raise ValueError(f"unsupported activation: {activation}")

    # Blend: value lanes pass through raw y, delta lanes get the activation.
    m = mask_ref[...]                      # (1, 2*D_out): 1.0 = value lane
    z = m * y + (1.0 - m) * delta          # (block, 2*D_out), f32

    # ---- out = value + (cumsum(delta) - mean(cumsum(delta))) ----
    # Single f32 matmul with M = [[I], [C]]  (precomputed, resident in VMEM).
    o_ref[...] = jnp.dot(z, m_ref[...],
                         preferred_element_type=jnp.float32).astype(o_ref.dtype)


def _matmul_dtype_default():
    """bf16 MXU operands on v6e/v7x; f32 otherwise (v5e and unknown)."""
    try:
        kind = jax.devices()[0].device_kind.lower()
    except Exception:
        return jnp.float32
    if ("v6" in kind) or ("v7" in kind):
        return jnp.bfloat16
    return jnp.float32


@functools.partial(jax.jit,
                   static_argnames=("block_batch", "activation", "use_bf16"))
def dqr_nc_forward(x, params, *, block_batch=512, activation='ELU',
                   use_bf16=None):
    """Pallas implementation of DQR_NC.forward.

    params = (vw1, vb1, vw2, vb2, dw1, db1, dw2, db2), weights stored as
    (in_features, out_features).
    """
    # TODO(synk): only 3-element value_layer/delta_layer configs (one hidden
    # Linear+ReLU per head) are fused here; deeper lists would need a loop
    # over additional hidden layers.
    (vw1, vb1, vw2, vb2, dw1, db1, dw2, db2) = params
    B, D_in = x.shape
    Hv = vw1.shape[1]
    Hd = dw1.shape[1]
    D_out = vw2.shape[1]
    assert dw2.shape[1] == D_out, "value and delta output widths must match"
    H2 = Hv + Hd

    if use_bf16 is None:
        mm_dtype = _matmul_dtype_default()
    else:
        mm_dtype = jnp.bfloat16 if use_bf16 else jnp.float32

    f32 = jnp.float32

    # ---- fused weights / biases (one-time wrapper work, jitted) ----
    w1_cat = jnp.concatenate([vw1, dw1], axis=1).astype(mm_dtype)   # (D_in, H2)
    b1_cat = jnp.concatenate([vb1, db1]).reshape(1, H2).astype(f32)

    w2_bd = jnp.zeros((H2, 2 * D_out), f32)
    w2_bd = w2_bd.at[:Hv, :D_out].set(vw2.astype(f32))
    w2_bd = w2_bd.at[Hv:, D_out:].set(dw2.astype(f32))
    w2_bd = w2_bd.astype(mm_dtype)                                   # (H2, 2*D_out)
    b2_cat = jnp.concatenate([vb2, db2]).reshape(1, 2 * D_out).astype(f32)

    # Per-lane mask: 1.0 on the value half, 0.0 on the delta half.
    mask = jnp.concatenate([jnp.ones((1, D_out), f32),
                            jnp.zeros((1, D_out), f32)], axis=1)

    # Combined cumsum + mean-centering + value-add matrix M = [[I], [C]].
    #   out_j = value_j + sum_k delta_k * [ (k<=j) - (D-k)/D ]
    k_idx = jnp.arange(D_out)[:, None]
    j_idx = jnp.arange(D_out)[None, :]
    C = (k_idx <= j_idx).astype(f32) - (D_out - k_idx).astype(f32) / D_out
    M = jnp.concatenate([jnp.eye(D_out, dtype=f32), C], axis=0)      # (2*D_out, D_out)

    # ---- batch tiling: big tiles, pad batch to a multiple of the tile ----
    bb = min(block_batch, ((B + 7) // 8) * 8)
    bb = max(8, ((bb + 7) // 8) * 8)
    B_pad = pl.cdiv(B, bb) * bb

    x_in = x.astype(mm_dtype)
    if B_pad != B:
        x_in = jnp.pad(x_in, ((0, B_pad - B), (0, 0)))

    grid = (B_pad // bb,)

    def replicated(shape):
        return pl.BlockSpec(shape, lambda i: (0, 0))

    kernel = functools.partial(_dqr_nc_kernel, activation=activation)

    out = pl.pallas_call(
        kernel,
        out_shape=jax.ShapeDtypeStruct((B_pad, D_out), x.dtype),
        grid_spec=pltpu.PrefetchScalarGridSpec(
            num_scalar_prefetch=0,
            grid=grid,
            in_specs=[
                pl.BlockSpec((bb, D_in), lambda i: (i, 0)),   # x tile
                replicated((D_in, H2)),                       # fused W1
                replicated((1, H2)),                          # fused b1
                replicated((H2, 2 * D_out)),                  # block-diag W2
                replicated((1, 2 * D_out)),                   # fused b2
                replicated((1, 2 * D_out)),                   # value/delta lane mask
                replicated((2 * D_out, D_out)),               # M = [[I],[C]]
            ],
            out_specs=pl.BlockSpec((bb, D_out), lambda i: (i, 0)),
        ),
        compiler_params=pltpu.CompilerParams(
            dimension_semantics=("parallel",)),
    )(x_in, w1_cat, b1_cat, w2_bd, b2_cat, mask, M)

    if B_pad != B:
        out = out[:B]
    return out


def init_params(key, value_layer, delta_layer, dtype=jnp.float32):
    """Deterministic parameter init matching the module's Linear shapes."""
    def linear(k, fan_in, fan_out):
        kw, kb = jax.random.split(k)
        bound = 1.0 / jnp.sqrt(fan_in)
        w = jax.random.uniform(kw, (fan_in, fan_out), dtype, -bound, bound)
        b = jax.random.uniform(kb, (fan_out,), dtype, -bound, bound)
        return w, b

    k = jax.random.split(key, 4)
    vw1, vb1 = linear(k[0], value_layer[0], value_layer[1])
    vw2, vb2 = linear(k[1], value_layer[1], value_layer[2])
    dw1, db1 = linear(k[2], delta_layer[0], delta_layer[1])
    dw2, db2 = linear(k[3], delta_layer[1], delta_layer[2])
    return (vw1, vb1, vw2, vb2, dw1, db1, dw2, db2)


def dqr_nc_reference(x, params):
    """Pure-JAX reference mirroring the PyTorch forward (activation='ELU')."""
    (vw1, vb1, vw2, vb2, dw1, db1, dw2, db2) = params
    h_v = jnp.maximum(x @ vw1 + vb1, 0.0)
    value = h_v @ vw2 + vb2
    h_d = jnp.maximum(x @ dw1 + db1, 0.0)
    d = h_d @ dw2 + db2
    delta = jnp.where(d > 0.0, d, jnp.exp(d) - 1.0) + 1.0
    cs = jnp.cumsum(delta, axis=1)
    cs0 = cs - jnp.mean(cs, axis=1, keepdims=True)
    return value + cs0


if __name__ == "__main__":
    # Small synthetic shapes consistent with the module's MLP structure.
    value_layer = [32, 32, 32]
    delta_layer = [32, 32, 32]
    batch = 64

    key = jax.random.PRNGKey(0)
    kx, kp = jax.random.split(key)
    x = jax.random.normal(kx, (batch, value_layer[0]), jnp.float32)
    params = init_params(kp, value_layer, delta_layer)

    ref = dqr_nc_reference(x, params)

    # f32-operand path: tight check against the pure-JAX reference.
    out_f32 = jax.block_until_ready(dqr_nc_forward(x, params, use_bf16=False))
    assert out_f32.shape == (batch, value_layer[-1])
    assert jnp.allclose(out_f32, ref, atol=1e-4, rtol=1e-4), "f32 mismatch"

    # Default (auto-detected) path; may use bf16 MXU operands on v6e/v7x,
    # so check with a loose tolerance.
    out_def = jax.block_until_ready(dqr_nc_forward(x, params))
    assert out_def.shape == (batch, value_layer[-1])
    assert bool(jnp.all(jnp.isfinite(out_def))), "non-finite output"
    assert jnp.allclose(out_def, ref, atol=5e-1, rtol=5e-2), "default-path mismatch"

    print("KERNEL_OK")
</pallas_src>

<mosaic_0001>
module attributes {stable_mosaic.version = 11 : i64} {
  func.func @_dqr_nc_kernel(%arg0: i32, %arg1: memref<64x32xf32, #tpu.memory_space<vmem>>, %arg2: memref<32x64xf32, #tpu.memory_space<vmem>>, %arg3: memref<1x64xf32, #tpu.memory_space<vmem>>, %arg4: memref<64x64xf32, #tpu.memory_space<vmem>>, %arg5: memref<1x64xf32, #tpu.memory_space<vmem>>, %arg6: memref<1x64xf32, #tpu.memory_space<vmem>>, %arg7: memref<64x32xf32, #tpu.memory_space<vmem>>, %arg8: memref<64x32xf32, #tpu.memory_space<vmem>>) attributes {dimension_semantics = [#tpu.dimension_semantics<parallel>], iteration_bounds = array<i64: 1>, scalar_prefetch = 0 : i64, scratch_operands = 0 : i64, tpu.core_type = #tpu.core_type<tc>, window_params = [{transform_indices = @transform_0, window_bounds = array<i64: 64, 32>}, {pipeline_mode = #tpu.pipeline_mode<synchronous>, transform_indices = @transform_1, window_bounds = array<i64: 32, 64>}, {pipeline_mode = #tpu.pipeline_mode<synchronous>, transform_indices = @transform_2, window_bounds = array<i64: 1, 64>}, {pipeline_mode = #tpu.pipeline_mode<synchronous>, transform_indices = @transform_3, window_bounds = array<i64: 64, 64>}, {pipeline_mode = #tpu.pipeline_mode<synchronous>, transform_indices = @transform_4, window_bounds = array<i64: 1, 64>}, {pipeline_mode = #tpu.pipeline_mode<synchronous>, transform_indices = @transform_5, window_bounds = array<i64: 1, 64>}, {pipeline_mode = #tpu.pipeline_mode<synchronous>, transform_indices = @transform_6, window_bounds = array<i64: 64, 32>}, {transform_indices = @transform_7, window_bounds = array<i64: 64, 32>}]} {
    %c0 = arith.constant 0 : index
    %c0_0 = arith.constant 0 : index
    %0 = vector.load %arg1[%c0, %c0_0] : memref<64x32xf32, #tpu.memory_space<vmem>>, vector<64x32xf32>
    %c0_1 = arith.constant 0 : index
    %c0_2 = arith.constant 0 : index
    %1 = vector.load %arg2[%c0_1, %c0_2] : memref<32x64xf32, #tpu.memory_space<vmem>>, vector<32x64xf32>
    %cst = arith.constant dense<0.000000e+00> : vector<64x64xf32>
    %2 = tpu.matmul %0, %1, %cst {dimension_numbers = #tpu.dot_dimension_numbers<[1], [0], [0], [1], [0, 0, 1, 1], [], []>} : vector<64x32xf32>, vector<32x64xf32>, vector<64x64xf32> -> vector<64x64xf32>
    %c0_3 = arith.constant 0 : index
    %c0_4 = arith.constant 0 : index
    %3 = vector.load %arg3[%c0_3, %c0_4] : memref<1x64xf32, #tpu.memory_space<vmem>>, vector<1x64xf32>
    %4 = vector.broadcast %3 : vector<1x64xf32> to vector<64x64xf32>
    %5 = arith.addf %2, %4 : vector<64x64xf32>
    %cst_5 = arith.constant 0.000000e+00 : f32
    %6 = vector.broadcast %cst_5 : f32 to vector<64x64xf32>
    %7 = arith.maximumf %5, %6 : vector<64x64xf32>
    %c0_6 = arith.constant 0 : index
    %c0_7 = arith.constant 0 : index
    %8 = vector.load %arg4[%c0_6, %c0_7] : memref<64x64xf32, #tpu.memory_space<vmem>>, vector<64x64xf32>
    %cst_8 = arith.constant dense<0.000000e+00> : vector<64x64xf32>
    %9 = tpu.matmul %7, %8, %cst_8 {dimension_numbers = #tpu.dot_dimension_numbers<[1], [0], [0], [1], [0, 0, 1, 1], [], []>} : vector<64x64xf32>, vector<64x64xf32>, vector<64x64xf32> -> vector<64x64xf32>
    %c0_9 = arith.constant 0 : index
    %c0_10 = arith.constant 0 : index
    %10 = vector.load %arg5[%c0_9, %c0_10] : memref<1x64xf32, #tpu.memory_space<vmem>>, vector<1x64xf32>
    %11 = vector.broadcast %10 : vector<1x64xf32> to vector<64x64xf32>
    %12 = arith.addf %9, %11 : vector<64x64xf32>
    %cst_11 = arith.constant 0.000000e+00 : f32
    %13 = vector.broadcast %cst_11 : f32 to vector<64x64xf32>
    %14 = arith.cmpf ogt, %12, %13 : vector<64x64xf32>
    %cst_12 = arith.constant 1.000000e+00 : f32
    %15 = vector.broadcast %cst_12 : f32 to vector<64x64xf32>
    %16 = arith.addf %12, %15 : vector<64x64xf32>
    %cst_13 = arith.constant 0.000000e+00 : f32
    %17 = vector.broadcast %cst_13 : f32 to vector<64x64xf32>
    %18 = arith.minimumf %12, %17 : vector<64x64xf32>
    %19 = math.exp %18 : vector<64x64xf32>
    %20 = arith.select %14, %16, %19 : vector<64x64xi1>, vector<64x64xf32>
    %c0_14 = arith.constant 0 : index
    %c0_15 = arith.constant 0 : index
    %21 = vector.load %arg6[%c0_14, %c0_15] : memref<1x64xf32, #tpu.memory_space<vmem>>, vector<1x64xf32>
    %22 = vector.broadcast %21 : vector<1x64xf32> to vector<64x64xf32>
    %23 = arith.mulf %22, %12 : vector<64x64xf32>
    %cst_16 = arith.constant 1.000000e+00 : f32
    %24 = vector.broadcast %cst_16 : f32 to vector<1x64xf32>
    %25 = arith.subf %24, %21 : vector<1x64xf32>
    %26 = vector.broadcast %25 : vector<1x64xf32> to vector<64x64xf32>
    %27 = arith.mulf %26, %20 : vector<64x64xf32>
    %28 = arith.addf %23, %27 : vector<64x64xf32>
    %c0_17 = arith.constant 0 : index
    %c0_18 = arith.constant 0 : index
    %29 = vector.load %arg7[%c0_17, %c0_18] : memref<64x32xf32, #tpu.memory_space<vmem>>, vector<64x32xf32>
    %cst_19 = arith.constant dense<0.000000e+00> : vector<64x32xf32>
    %30 = tpu.matmul %28, %29, %cst_19 {dimension_numbers = #tpu.dot_dimension_numbers<[1], [0], [0], [1], [0, 0, 1, 1], [], []>} : vector<64x64xf32>, vector<64x32xf32>, vector<64x32xf32> -> vector<64x32xf32>
    %c0_20 = arith.constant 0 : index
    %c0_21 = arith.constant 0 : index
    %31 = vector.load %arg8[%c0_20, %c0_21] : memref<64x32xf32, #tpu.memory_space<vmem>>, vector<64x32xf32>
    tpu.vector_store %arg8[%c0_20, %c0_21], %30 {strides = array<i32>} : memref<64x32xf32, #tpu.memory_space<vmem>>, vector<64x32xf32>,
    return
  }
  func.func @transform_0(%arg0: i32) -> (i32, i32) {
    %c0_i32 = arith.constant 0 : i32
    %c0_i32_0 = arith.constant 0 : i32
    return %arg0, %c0_i32 : i32, i32
  }
  func.func @transform_1(%arg0: i32) -> (i32, i32) {
    %c0_i32 = arith.constant 0 : i32
    %c0_i32_0 = arith.constant 0 : i32
    %c0_i32_1 = arith.constant 0 : i32
    return %c0_i32, %c0_i32_0 : i32, i32
  }
  func.func @transform_2(%arg0: i32) -> (i32, i32) {
    %c0_i32 = arith.constant 0 : i32
    %c0_i32_0 = arith.constant 0 : i32
    %c0_i32_1 = arith.constant 0 : i32
    return %c0_i32, %c0_i32_0 : i32, i32
  }
  func.func @transform_3(%arg0: i32) -> (i32, i32) {
    %c0_i32 = arith.constant 0 : i32
    %c0_i32_0 = arith.constant 0 : i32
    %c0_i32_1 = arith.constant 0 : i32
    return %c0_i32, %c0_i32_0 : i32, i32
  }
  func.func @transform_4(%arg0: i32) -> (i32, i32) {
    %c0_i32 = arith.constant 0 : i32
    %c0_i32_0 = arith.constant 0 : i32
    %c0_i32_1 = arith.constant 0 : i32
    return %c0_i32, %c0_i32_0 : i32, i32
  }
  func.func @transform_5(%arg0: i32) -> (i32, i32) {
    %c0_i32 = arith.constant 0 : i32
    %c0_i32_0 = arith.constant 0 : i32
    %c0_i32_1 = arith.constant 0 : i32
    return %c0_i32, %c0_i32_0 : i32, i32
  }
  func.func @transform_6(%arg0: i32) -> (i32, i32) {
    %c0_i32 = arith.constant 0 : i32
    %c0_i32_0 = arith.constant 0 : i32
    %c0_i32_1 = arith.constant 0 : i32
    return %c0_i32, %c0_i32_0 : i32, i32
  }
  func.func @transform_7(%arg0: i32) -> (i32, i32) {
    %c0_i32 = arith.constant 0 : i32
    %c0_i32_0 = arith.constant 0 : i32
    return %arg0, %c0_i32 : i32, i32
  }
}

</mosaic_0001>

<llo_original>
// kernel: dqr_nc_forward.1
$region0: #{dqr_nc_forward.1}
  #allocation0 [shape = 'u32[]', space=smem, size = 0x4, offset = 0x4, fixed_abs, tag = 'smem constant byte address 0x4 - core index']
  #allocation1 [shape = 'u32[144,128]{1,0:T(1,128)}', space=vmem, size = 0x12000, scoped, tag = 'internal scratch']
  %s0 = inlined_call_operand.vmem [shape: f32[64,32], index: 0, kind: input, shape index: {}]
  %s1 = inlined_call_operand.vmem [shape: f32[32,64], index: 1, kind: input, shape index: {}]
  %s2 = inlined_call_operand.vmem [shape: f32[1,64], index: 2, kind: input, shape index: {}]
  %s3 = inlined_call_operand.vmem [shape: f32[64,64], index: 3, kind: input, shape index: {}]
  %s4 = inlined_call_operand.vmem [shape: f32[1,64], index: 4, kind: input, shape index: {}]
  %s5 = inlined_call_operand.vmem [shape: f32[1,64], index: 5, kind: input, shape index: {}]
  %s6 = inlined_call_operand.vmem [shape: f32[64,32], index: 6, kind: input, shape index: {}]
  %s7 = inlined_call_operand.vmem [shape: f32[64,32], index: 7, kind: output, shape index: {}]
  %s8 = sld [smem:[#allocation0]]
  $region38: #{dqr_nc_forward.1} parent=0
    _
  %s10 = ssub.s32 1, %s8
  %s11 = scalar_select 0, %s10, %s8
  // Predicated region
  $region2: #{dqr_nc_forward.1} parent=0 // pred_check
    _
  $region3: #{dqr_nc_forward.1} parent=0 // pred_check_branch
    %13 = sbr.rel (0) target = $region5
  $region4: #{dqr_nc_forward.1} parent=0 // pred_region
    _
  $region5: #{dqr_nc_forward.1} parent=0 // pred_fallthru
    _
  // Predicated region
  $region6: #{dqr_nc_forward.1} parent=0 // pred_check
    _
  $region7: #{dqr_nc_forward.1} parent=0 // pred_check_branch
    %15 = sbr.rel (0) target = $region9
  $region8: #{dqr_nc_forward.1} parent=0 // pred_region
    _
  $region9: #{dqr_nc_forward.1} parent=0 // pred_fallthru
    _
  // Predicated region
  $region10: #{dqr_nc_forward.1} parent=0 // pred_check
    _
  $region11: #{dqr_nc_forward.1} parent=0 // pred_check_branch
    %17 = sbr.rel (0) target = $region13
  $region12: #{dqr_nc_forward.1} parent=0 // pred_region
    _
  $region13: #{dqr_nc_forward.1} parent=0 // pred_fallthru
    _
  // Predicated region
  $region14: #{dqr_nc_forward.1} parent=0 // pred_check
    _
  $region15: #{dqr_nc_forward.1} parent=0 // pred_check_branch
    %19 = sbr.rel (0) target = $region17
  $region16: #{dqr_nc_forward.1} parent=0 // pred_region
    _
  $region17: #{dqr_nc_forward.1} parent=0 // pred_fallthru
    _
  // Predicated region
  $region18: #{dqr_nc_forward.1} parent=0 // pred_check
    _
  $region19: #{dqr_nc_forward.1} parent=0 // pred_check_branch
    %21 = sbr.rel (0) target = $region21
  $region20: #{dqr_nc_forward.1} parent=0 // pred_region
    _
  $region21: #{dqr_nc_forward.1} parent=0 // pred_fallthru
    _
  // Predicated region
  $region22: #{dqr_nc_forward.1} parent=0 // pred_check
    _
  $region23: #{dqr_nc_forward.1} parent=0 // pred_check_branch
    %23 = sbr.rel (0) target = $region25
  $region24: #{dqr_nc_forward.1} parent=0 // pred_region
    _
  $region25: #{dqr_nc_forward.1} parent=0 // pred_fallthru
    _
  // Predicated region
  $region26: #{dqr_nc_forward.1} parent=0 // pred_check
    _
  $region27: #{dqr_nc_forward.1} parent=0 // pred_check_branch
    %25 = sbr.rel (0) target = $region29
  $region28: #{dqr_nc_forward.1} parent=0 // pred_region
    _
  $region29: #{dqr_nc_forward.1} parent=0 // pred_fallthru
    _
  %v26 = vld [vmem:[%s0] sm:$0xff]
  %v27 = vld [vmem:[%s0 + $0x8] sm:$0xff]
  %v28 = vld [vmem:[%s0 + $0x10] sm:$0xff]
  %v29 = vld [vmem:[%s0 + $0x18] sm:$0xff]
  %v30 = vld [vmem:[%s0 + $0x20] sm:$0xff]
  %v31 = vld [vmem:[%s0 + $0x28] sm:$0xff]
  %v32 = vld [vmem:[%s0 + $0x30] sm:$0xff]
  %v33 = vld [vmem:[%s0 + $0x38] sm:$0xff]
  %v34 = vld [vmem:[%s1] sm:$0xff]
  %v35 = vld [vmem:[%s1 + $0x8] sm:$0xff]
  %v36 = vld [vmem:[%s1 + $0x10] sm:$0xff]
  %v37 = vld [vmem:[%s1 + $0x18] sm:$0xff]
  %v38 = vld [vmem:[%s2] sm:$0x1]
  %v40 = vlaneseq
  %v41 = vshrl.u32 %v40, 7
  %v42 = vsub.s32 0, %v41
  %v43 = vrot.slane %v38, %v42
  %vm45 = vcmask 261120
  %v47 = vsel %vm45, %v26, 0
  %v50 = vsel %vm45, %v27, 0
  %v53 = vsel %vm45, %v28, 0
  %v56 = vsel %vm45, %v29, 0
  %v59 = vsel %vm45, %v30, 0
  %v62 = vsel %vm45, %v31, 0
  %v65 = vsel %vm45, %v32, 0
  %v68 = vsel %vm45, %v33, 0
  %70 = vmatprep.subr.mxu0 0.0
  %71 = vmatpush1.msra.mxu0 0.0
  %72 = vmatprep.subr.mxu0 0.0
  %73 = vmatpush1.msra.mxu0 0.0
  %74 = vmatprep.subr.mxu0 0.0
  %75 = vmatpush1.msra.mxu0 0.0
  %76 = vmatprep.subr.mxu0 0.0
  %77 = vmatpush1.msra.mxu0 0.0
  %78 = vmatprep.subr.mxu0 0.0
  %79 = vmatpush1.msra.mxu0 0.0
  %80 = vmatprep.subr.mxu0 0.0
  %81 = vmatpush1.msra.mxu0 0.0
  %82 = vmatprep.subr.mxu0 0.0
  %83 = vmatpush1.msra.mxu0 0.0
  %84 = vmatprep.subr.mxu0 0.0
  %85 = vmatpush1.msra.mxu0 0.0
  %86 = vmatprep.subr.mxu0 0.0
  %87 = vmatpush1.msra.mxu0 0.0
  %88 = vmatprep.subr.mxu0 0.0
  %89 = vmatpush1.msra.mxu0 0.0
  %90 = vmatprep.subr.mxu0 0.0
  %91 = vmatpush1.msra.mxu0 0.0
  %92 = vmatprep.subr.mxu0 0.0
  %93 = vmatpush1.msra.mxu0 0.0
  %94 = vmatprep.subr.mxu0 0.0
  %95 = vmatpush1.msra.mxu0 %v37
  %96 = vmatprep.subr.mxu0 0.0
  %97 = vmatpush1.msra.mxu0 %v36
  %98 = vmatprep.subr.mxu0 0.0
  %99 = vmatpush1.msra.mxu0 %v35
  %100 = vmatprep.subr.mxu0 0.0
  %101 = vmatpush1.msra.mxu0 %v34
  %102 = vmatprep.subr.mxu0 0.0
  %103 = vmatpush2.msra.mxu0 0.0
  %104 = vmatprep.subr.mxu0 0.0
  %105 = vmatpush2.msra.mxu0 0.0
  %106 = vmatprep.subr.mxu0 0.0
  %107 = vmatpush2.msra.mxu0 0.0
  %108 = vmatprep.subr.mxu0 0.0
  %109 = vmatpush2.msra.mxu0 0.0
  %110 = vmatprep.subr.mxu0 0.0
  %111 = vmatpush2.msra.mxu0 0.0
  %112 = vmatprep.subr.mxu0 0.0
  %113 = vmatpush2.msra.mxu0 0.0
  %114 = vmatprep.subr.mxu0 0.0
  %115 = vmatpush2.msra.mxu0 0.0
  %116 = vmatprep.subr.mxu0 0.0
  %117 = vmatpush2.msra.mxu0 0.0
  %118 = vmatprep.subr.mxu0 0.0
  %119 = vmatpush2.msra.mxu0 0.0
  %120 = vmatprep.subr.mxu0 0.0
  %121 = vmatpush2.msra.mxu0 0.0
  %122 = vmatprep.subr.mxu0 0.0
  %123 = vmatpush2.msra.mxu0 0.0
  %124 = vmatprep.subr.mxu0 0.0
  %125 = vmatpush2.msra.mxu0 0.0
  %126 = vmatprep.subr.mxu0 0.0
  %127 = vmatpush2.msra.mxu0 0.0
  %128 = vmatprep.subr.mxu0 0.0
  %129 = vmatpush2.msra.mxu0 0.0
  %130 = vmatprep.subr.mxu0 0.0
  %131 = vmatpush2.msra.mxu0 0.0
  %132 = vmatprep.subr.mxu0 0.0
  %133 = vmatpush2.msra.mxu0 0.0
  %134 = vmatprep.mubr.f32.mxu0 0.0
  %135 = vmatmul.mubr.f32.gmra.mxu0 %v47
  %v136 = vpop.f32.mrf.mxu0
  %v137 = vadd.f32 %v43, %v136
  %v138 = vpop.f32.mrf.mxu0
  %139 = vmatprep.mubr.f32.mxu0 0.0
  %140 = vmatmul.mubr.f32.gmra.mxu0 %v50
  %v141 = vpop.f32.mrf.mxu0
  %v142 = vadd.f32 %v43, %v141
  %v143 = vpop.f32.mrf.mxu0
  %144 = vmatprep.mubr.f32.mxu0 0.0
  %145 = vmatmul.mubr.f32.gmra.mxu0 %v53
  %v146 = vpop.f32.mrf.mxu0
  %v147 = vadd.f32 %v43, %v146
  %v148 = vpop.f32.mrf.mxu0
  %149 = vmatprep.mubr.f32.mxu0 0.0
  %150 = vmatmul.mubr.f32.gmra.mxu0 %v56
  %v151 = vpop.f32.mrf.mxu0
  %v152 = vadd.f32 %v43, %v151
  %v153 = vpop.f32.mrf.mxu0
  %154 = vmatprep.mubr.f32.mxu0 0.0
  %155 = vmatmul.mubr.f32.gmra.mxu0 %v59
  %v156 = vpop.f32.mrf.mxu0
  %v157 = vadd.f32 %v43, %v156
  %v158 = vpop.f32.mrf.mxu0
  %159 = vmatprep.mubr.f32.mxu0 0.0
  %160 = vmatmul.mubr.f32.gmra.mxu0 %v62
  %v161 = vpop.f32.mrf.mxu0
  %v162 = vadd.f32 %v43, %v161
  %v163 = vpop.f32.mrf.mxu0
  %164 = vmatprep.mubr.f32.mxu0 0.0
  %165 = vmatmul.mubr.f32.gmra.mxu0 %v65
  %v166 = vpop.f32.mrf.mxu0
  %v167 = vadd.f32 %v43, %v166
  %v168 = vpop.f32.mrf.mxu0
  %169 = vmatprep.mubr.f32.mxu0 0.0
  %170 = vmatmul.mubr.f32.gmra.mxu0 %v68
  %v171 = vpop.f32.mrf.mxu0
  %v172 = vadd.f32 %v43, %v171
  %v173 = vpop.f32.mrf.mxu0
  %174 = vdwg.mxu0
  %v175 = vmax.f32 %v137, 0.0
  %v176 = vmax.f32 %v142, 0.0
  %v177 = vmax.f32 %v147, 0.0
  %v178 = vmax.f32 %v152, 0.0
  %v179 = vmax.f32 %v157, 0.0
  %v180 = vmax.f32 %v162, 0.0
  %v181 = vmax.f32 %v167, 0.0
  %v182 = vmax.f32 %v172, 0.0
  %v183 = vld [vmem:[%s3] sm:$0xff]
  %v184 = vld [vmem:[%s3 + $0x8] sm:$0xff]
  %v185 = vld [vmem:[%s3 + $0x10] sm:$0xff]
  %v186 = vld [vmem:[%s3 + $0x18] sm:$0xff]
  %v187 = vld [vmem:[%s3 + $0x20] sm:$0xff]
  %v188 = vld [vmem:[%s3 + $0x28] sm:$0xff]
  %v189 = vld [vmem:[%s3 + $0x30] sm:$0xff]
  %v190 = vld [vmem:[%s3 + $0x38] sm:$0xff]
  %v191 = vld [vmem:[%s4] sm:$0x1]
  %v193 = vlaneseq
  %v194 = vshrl.u32 %v193, 7
  %v195 = vsub.s32 0, %v194
  %v196 = vrot.slane %v191, %v195
  %vm198 = vcmask 523264
  %v200 = vsel %vm198, %v175, 0
  %v203 = vsel %vm198, %v176, 0
  %v206 = vsel %vm198, %v177, 0
  %v209 = vsel %vm198, %v178, 0
  %v212 = vsel %vm198, %v179, 0
  %v215 = vsel %vm198, %v180, 0
  %v218 = vsel %vm198, %v181, 0
  %v221 = vsel %vm198, %v182, 0
  %223 = vmatprep.subr.mxu0 0.0
  %224 = vmatpush1.msra.mxu0 0.0
  %225 = vmatprep.subr.mxu0 0.0
  %226 = vmatpush1.msra.mxu0 0.0
  %227 = vmatprep.subr.mxu0 0.0
  %228 = vmatpush1.msra.mxu0 0.0
  %229 = vmatprep.subr.mxu0 0.0
  %230 = vmatpush1.msra.mxu0 0.0
  %231 = vmatprep.subr.mxu0 0.0
  %232 = vmatpush1.msra.mxu0 0.0
  %233 = vmatprep.subr.mxu0 0.0
  %234 = vmatpush1.msra.mxu0 0.0
  %235 = vmatprep.subr.mxu0 0.0
  %236 = vmatpush1.msra.mxu0 0.0
  %237 = vmatprep.subr.mxu0 0.0
  %238 = vmatpush1.msra.mxu0 0.0
  %239 = vmatprep.subr.mxu0 0.0
  %240 = vmatpush1.msra.mxu0 %v190
  %241 = vmatprep.subr.mxu0 0.0
  %242 = vmatpush1.msra.mxu0 %v189
  %243 = vmatprep.subr.mxu0 0.0
  %244 = vmatpush1.msra.mxu0 %v188
  %245 = vmatprep.subr.mxu0 0.0
  %246 = vmatpush1.msra.mxu0 %v187
  %247 = vmatprep.subr.mxu0 0.0
  %248 = vmatpush1.msra.mxu0 %v186
  %249 = vmatprep.subr.mxu0 0.0
  %250 = vmatpush1.msra.mxu0 %v185
  %251 = vmatprep.subr.mxu0 0.0
  %252 = vmatpush1.msra.mxu0 %v184
  %253 = vmatprep.subr.mxu0 0.0
  %254 = vmatpush1.msra.mxu0 %v183
  %255 = vmatprep.subr.mxu0 0.0
  %256 = vmatpush2.msra.mxu0 0.0
  %257 = vmatprep.subr.mxu0 0.0
  %258 = vmatpush2.msra.mxu0 0.0
  %259 = vmatprep.subr.mxu0 0.0
  %260 = vmatpush2.msra.mxu0 0.0
  %261 = vmatprep.subr.mxu0 0.0
  %262 = vmatpush2.msra.mxu0 0.0
  %263 = vmatprep.subr.mxu0 0.0
  %264 = vmatpush2.msra.mxu0 0.0
  %265 = vmatprep.subr.mxu0 0.0
  %266 = vmatpush2.msra.mxu0 0.0
  %267 = vmatprep.subr.mxu0 0.0
  %268 = vmatpush2.msra.mxu0 0.0
  %269 = vmatprep.subr.mxu0 0.0
  %270 = vmatpush2.msra.mxu0 0.0
  %271 = vmatprep.subr.mxu0 0.0
  %272 = vmatpush2.msra.mxu0 0.0
  %273 = vmatprep.subr.mxu0 0.0
  %274 = vmatpush2.msra.mxu0 0.0
  %275 = vmatprep.subr.mxu0 0.0
  %276 = vmatpush2.msra.mxu0 0.0
  %277 = vmatprep.subr.mxu0 0.0
  %278 = vmatpush2.msra.mxu0 0.0
  %279 = vmatprep.subr.mxu0 0.0
  %280 = vmatpush2.msra.mxu0 0.0
  %281 = vmatprep.subr.mxu0 0.0
  %282 = vmatpush2.msra.mxu0 0.0
  %283 = vmatprep.subr.mxu0 0.0
  %284 = vmatpush2.msra.mxu0 0.0
  %285 = vmatprep.subr.mxu0 0.0
  %286 = vmatpush2.msra.mxu0 0.0
  %287 = vmatprep.mubr.f32.mxu0 0.0
  %288 = vmatmul.mubr.f32.gmra.mxu0 %v200
  %v289 = vpop.f32.mrf.mxu0
  %v290 = vadd.f32 %v196, %v289
  %v291 = vpop.f32.mrf.mxu0
  %292 = vmatprep.mubr.f32.mxu0 0.0
  %293 = vmatmul.mubr.f32.gmra.mxu0 %v203
  %v294 = vpop.f32.mrf.mxu0
  %v295 = vadd.f32 %v196, %v294
  %v296 = vpop.f32.mrf.mxu0
  %297 = vmatprep.mubr.f32.mxu0 0.0
  %298 = vmatmul.mubr.f32.gmra.mxu0 %v206
  %v299 = vpop.f32.mrf.mxu0
  %v300 = vadd.f32 %v196, %v299
  %v301 = vpop.f32.mrf.mxu0
  %302 = vmatprep.mubr.f32.mxu0 0.0
  %303 = vmatmul.mubr.f32.gmra.mxu0 %v209
  %v304 = vpop.f32.mrf.mxu0
  %v305 = vadd.f32 %v196, %v304
  %v306 = vpop.f32.mrf.mxu0
  %307 = vmatprep.mubr.f32.mxu0 0.0
  %308 = vmatmul.mubr.f32.gmra.mxu0 %v212
  %v309 = vpop.f32.mrf.mxu0
  %v310 = vadd.f32 %v196, %v309
  %v311 = vpop.f32.mrf.mxu0
  %312 = vmatprep.mubr.f32.mxu0 0.0
  %313 = vmatmul.mubr.f32.gmra.mxu0 %v215
  %v314 = vpop.f32.mrf.mxu0
  %v315 = vadd.f32 %v196, %v314
  %v316 = vpop.f32.mrf.mxu0
  %317 = vmatprep.mubr.f32.mxu0 0.0
  %318 = vmatmul.mubr.f32.gmra.mxu0 %v218
  %v319 = vpop.f32.mrf.mxu0
  %v320 = vadd.f32 %v196, %v319
  %v321 = vpop.f32.mrf.mxu0
  %322 = vmatprep.mubr.f32.mxu0 0.0
  %323 = vmatmul.mubr.f32.gmra.mxu0 %v221
  %v324 = vpop.f32.mrf.mxu0
  %v325 = vadd.f32 %v196, %v324
  %v326 = vpop.f32.mrf.mxu0
  %327 = vdwg.mxu0
  %vm328 = vcmp.gt.f32.partialorder %v290, 0.0
  %vm329 = vcmp.gt.f32.partialorder %v295, 0.0
  %vm330 = vcmp.gt.f32.partialorder %v300, 0.0
  %vm331 = vcmp.gt.f32.partialorder %v305, 0.0
  %vm332 = vcmp.gt.f32.partialorder %v310, 0.0
  %vm333 = vcmp.gt.f32.partialorder %v315, 0.0
  %vm334 = vcmp.gt.f32.partialorder %v320, 0.0
  %vm335 = vcmp.gt.f32.partialorder %v325, 0.0
  %v336 = vadd.f32 %v290, 1.0
  %v337 = vadd.f32 %v295, 1.0
  %v338 = vadd.f32 %v300, 1.0
  %v339 = vadd.f32 %v305, 1.0
  %v340 = vadd.f32 %v310, 1.0
  %v341 = vadd.f32 %v315, 1.0
  %v342 = vadd.f32 %v320, 1.0
  %v343 = vadd.f32 %v325, 1.0
  %v344 = vmin.f32 %v290, 0.0
  %v345 = vmin.f32 %v295, 0.0
  %v346 = vmin.f32 %v300, 0.0
  %v347 = vmin.f32 %v305, 0.0
  %v348 = vmin.f32 %v310, 0.0
  %v349 = vmin.f32 %v315, 0.0
  %v350 = vmin.f32 %v320, 0.0
  %v351 = vmin.f32 %v325, 0.0
  %v352 = vmul.f32 %v344, 1.442695
  %v353 = vpow.pop %v352
  %v354 = vmul.f32 %v345, 1.442695
  %v355 = vpow.pop %v354
  %v356 = vmul.f32 %v346, 1.442695
  %v357 = vpow.pop %v356
  %v358 = vmul.f32 %v347, 1.442695
  %v359 = vpow.pop %v358
  %v360 = vmul.f32 %v348, 1.442695
  %v361 = vpow.pop %v360
  %v362 = vmul.f32 %v349, 1.442695
  %v363 = vpow.pop %v362
  %v364 = vmul.f32 %v350, 1.442695
  %v365 = vpow.pop %v364
  %v366 = vmul.f32 %v351, 1.442695
  %v367 = vpow.pop %v366
  %v368 = vsel %vm328, %v336, %v353
  %v369 = vsel %vm329, %v337, %v355
  %v370 = vsel %vm330, %v338, %v357
  %v371 = vsel %vm331, %v339, %v359
  %v372 = vsel %vm332, %v340, %v361
  %v373 = vsel %vm333, %v341, %v363
  %v374 = vsel %vm334, %v342, %v365
  %v375 = vsel %vm335, %v343, %v367
  %v376 = vld [vmem:[%s5] sm:$0x1]
  %v378 = vlaneseq
  %v379 = vshrl.u32 %v378, 7
  %v380 = vsub.s32 0, %v379
  %v381 = vrot.slane %v376, %v380
  %v383 = vmul.f32 %v381, %v290
  %v384 = vmul.f32 %v381, %v295
  %v385 = vmul.f32 %v381, %v300
  %v386 = vmul.f32 %v381, %v305
  %v387 = vmul.f32 %v381, %v310
  %v388 = vmul.f32 %v381, %v315
  %v389 = vmul.f32 %v381, %v320
  %v390 = vmul.f32 %v381, %v325
  %v391 = vsub.f32 1.0, %v376
  %v393 = vlaneseq
  %v394 = vshrl.u32 %v393, 7
  %v395 = vsub.s32 0, %v394
  %v396 = vrot.slane %v391, %v395
  %v398 = vmul.f32 %v396, %v368
  %v399 = vmul.f32 %v396, %v369
  %v400 = vmul.f32 %v396, %v370
  %v401 = vmul.f32 %v396, %v371
  %v402 = vmul.f32 %v396, %v372
  %v403 = vmul.f32 %v396, %v373
  %v404 = vmul.f32 %v396, %v374
  %v405 = vmul.f32 %v396, %v375
  %v406 = vadd.f32 %v383, %v398
  %v407 = vadd.f32 %v384, %v399
  %v408 = vadd.f32 %v385, %v400
  %v409 = vadd.f32 %v386, %v401
  %v410 = vadd.f32 %v387, %v402
  %v411 = vadd.f32 %v388, %v403
  %v412 = vadd.f32 %v389, %v404
  %v413 = vadd.f32 %v390, %v405
  %v414 = vld [vmem:[%s6] sm:$0xff]
  %v415 = vld [vmem:[%s6 + $0x8] sm:$0xff]
  %v416 = vld [vmem:[%s6 + $0x10] sm:$0xff]
  %v417 = vld [vmem:[%s6 + $0x18] sm:$0xff]
  %v418 = vld [vmem:[%s6 + $0x20] sm:$0xff]
  %v419 = vld [vmem:[%s6 + $0x28] sm:$0xff]
  %v420 = vld [vmem:[%s6 + $0x30] sm:$0xff]
  %v421 = vld [vmem:[%s6 + $0x38] sm:$0xff]
  %v423 = vsel %vm198, %v406, 0
  %v426 = vsel %vm198, %v407, 0
  %v429 = vsel %vm198, %v408, 0
  %v432 = vsel %vm198, %v409, 0
  %v435 = vsel %vm198, %v410, 0
  %v438 = vsel %vm198, %v411, 0
  %v441 = vsel %vm198, %v412, 0
  %v444 = vsel %vm198, %v413, 0
  %446 = vmatprep.subr.mxu0 0.0
  %447 = vmatpush1.msra.mxu0 0.0
  %448 = vmatprep.subr.mxu0 0.0
  %449 = vmatpush1.msra.mxu0 0.0
  %450 = vmatprep.subr.mxu0 0.0
  %451 = vmatpush1.msra.mxu0 0.0
  %452 = vmatprep.subr.mxu0 0.0
  %453 = vmatpush1.msra.mxu0 0.0
  %454 = vmatprep.subr.mxu0 0.0
  %455 = vmatpush1.msra.mxu0 0.0
  %456 = vmatprep.subr.mxu0 0.0
  %457 = vmatpush1.msra.mxu0 0.0
  %458 = vmatprep.subr.mxu0 0.0
  %459 = vmatpush1.msra.mxu0 0.0
  %460 = vmatprep.subr.mxu0 0.0
  %461 = vmatpush1.msra.mxu0 0.0
  %462 = vmatprep.subr.mxu0 0.0
  %463 = vmatpush1.msra.mxu0 %v421
  %464 = vmatprep.subr.mxu0 0.0
  %465 = vmatpush1.msra.mxu0 %v420
  %466 = vmatprep.subr.mxu0 0.0
  %467 = vmatpush1.msra.mxu0 %v419
  %468 = vmatprep.subr.mxu0 0.0
  %469 = vmatpush1.msra.mxu0 %v418
  %470 = vmatprep.subr.mxu0 0.0
  %471 = vmatpush1.msra.mxu0 %v417
  %472 = vmatprep.subr.mxu0 0.0
  %473 = vmatpush1.msra.mxu0 %v416
  %474 = vmatprep.subr.mxu0 0.0
  %475 = vmatpush1.msra.mxu0 %v415
  %476 = vmatprep.subr.mxu0 0.0
  %477 = vmatpush1.msra.mxu0 %v414
  %478 = vmatprep.subr.mxu0 0.0
  %479 = vmatpush2.msra.mxu0 0.0
  %480 = vmatprep.subr.mxu0 0.0
  %481 = vmatpush2.msra.mxu0 0.0
  %482 = vmatprep.subr.mxu0 0.0
  %483 = vmatpush2.msra.mxu0 0.0
  %484 = vmatprep.subr.mxu0 0.0
  %485 = vmatpush2.msra.mxu0 0.0
  %486 = vmatprep.subr.mxu0 0.0
  %487 = vmatpush2.msra.mxu0 0.0
  %488 = vmatprep.subr.mxu0 0.0
  %489 = vmatpush2.msra.mxu0 0.0
  %490 = vmatprep.subr.mxu0 0.0
  %491 = vmatpush2.msra.mxu0 0.0
  %492 = vmatprep.subr.mxu0 0.0
  %493 = vmatpush2.msra.mxu0 0.0
  %494 = vmatprep.subr.mxu0 0.0
  %495 = vmatpush2.msra.mxu0 0.0
  %496 = vmatprep.subr.mxu0 0.0
  %497 = vmatpush2.msra.mxu0 0.0
  %498 = vmatprep.subr.mxu0 0.0
  %499 = vmatpush2.msra.mxu0 0.0
  %500 = vmatprep.subr.mxu0 0.0
  %501 = vmatpush2.msra.mxu0 0.0
  %502 = vmatprep.subr.mxu0 0.0
  %503 = vmatpush2.msra.mxu0 0.0
  %504 = vmatprep.subr.mxu0 0.0
  %505 = vmatpush2.msra.mxu0 0.0
  %506 = vmatprep.subr.mxu0 0.0
  %507 = vmatpush2.msra.mxu0 0.0
  %508 = vmatprep.subr.mxu0 0.0
  %509 = vmatpush2.msra.mxu0 0.0
  %510 = vmatprep.mubr.f32.mxu0 0.0
  %511 = vmatmul.mubr.f32.gmra.mxu0 %v423
  %v512 = vpop.f32.mrf.mxu0
  %v513 = vadd.f32 0.0, %v512
  %v514 = vpop.f32.mrf.mxu0
  %515 = vmatprep.mubr.f32.mxu0 0.0
  %516 = vmatmul.mubr.f32.gmra.mxu0 %v426
  %v517 = vpop.f32.mrf.mxu0
  %v518 = vadd.f32 0.0, %v517
  %v519 = vpop.f32.mrf.mxu0
  %520 = vmatprep.mubr.f32.mxu0 0.0
  %521 = vmatmul.mubr.f32.gmra.mxu0 %v429
  %v522 = vpop.f32.mrf.mxu0
  %v523 = vadd.f32 0.0, %v522
  %v524 = vpop.f32.mrf.mxu0
  %525 = vmatprep.mubr.f32.mxu0 0.0
  %526 = vmatmul.mubr.f32.gmra.mxu0 %v432
  %v527 = vpop.f32.mrf.mxu0
  %v528 = vadd.f32 0.0, %v527
  %v529 = vpop.f32.mrf.mxu0
  %530 = vmatprep.mubr.f32.mxu0 0.0
  %531 = vmatmul.mubr.f32.gmra.mxu0 %v435
  %v532 = vpop.f32.mrf.mxu0
  %v533 = vadd.f32 0.0, %v532
  %v534 = vpop.f32.mrf.mxu0
  %535 = vmatprep.mubr.f32.mxu0 0.0
  %536 = vmatmul.mubr.f32.gmra.mxu0 %v438
  %v537 = vpop.f32.mrf.mxu0
  %v538 = vadd.f32 0.0, %v537
  %v539 = vpop.f32.mrf.mxu0
  %540 = vmatprep.mubr.f32.mxu0 0.0
  %541 = vmatmul.mubr.f32.gmra.mxu0 %v441
  %v542 = vpop.f32.mrf.mxu0
  %v543 = vadd.f32 0.0, %v542
  %v544 = vpop.f32.mrf.mxu0
  %545 = vmatprep.mubr.f32.mxu0 0.0
  %546 = vmatmul.mubr.f32.gmra.mxu0 %v444
  %v547 = vpop.f32.mrf.mxu0
  %v548 = vadd.f32 0.0, %v547
  %v549 = vpop.f32.mrf.mxu0
  %550 = vdwg.mxu0
  %551 = vst.msk [vmem:[%s7] sm:$0xff] %vm45, %v513
  %552 = vst.msk [vmem:[%s7 + $0x8] sm:$0xff] %vm45, %v518
  %553 = vst.msk [vmem:[%s7 + $0x10] sm:$0xff] %vm45, %v523
  %554 = vst.msk [vmem:[%s7 + $0x18] sm:$0xff] %vm45, %v528
  %555 = vst.msk [vmem:[%s7 + $0x20] sm:$0xff] %vm45, %v533
  %556 = vst.msk [vmem:[%s7 + $0x28] sm:$0xff] %vm45, %v538
  %557 = vst.msk [vmem:[%s7 + $0x30] sm:$0xff] %vm45, %v543
  %558 = vst.msk [vmem:[%s7 + $0x38] sm:$0xff] %vm45, %v548
  // Predicated region
  $region30: #{dqr_nc_forward.1} parent=0 // pred_check
    _
  $region31: #{dqr_nc_forward.1} parent=0 // pred_check_branch
    %560 = sbr.rel (0) target = $region33
  $region32: #{dqr_nc_forward.1} parent=0 // pred_region
    _
  $region33: #{dqr_nc_forward.1} parent=0 // pred_fallthru
    _
  // Predicated region
  $region34: #{dqr_nc_forward.1} parent=0 // pred_check
    _
  $region35: #{dqr_nc_forward.1} parent=0 // pred_check_branch
    %562 = sbr.rel (0) target = $region37
  $region36: #{dqr_nc_forward.1} parent=0 // pred_region
    _
  $region37: #{dqr_nc_forward.1} parent=0 // pred_fallthru
    _

</llo_original>
